<compile_context>
chip_gen: v5e
topology: v5e:2x2
jax: 0.10.0
libtpu: 0.0.40
codegen_flags: <defaults>
</compile_context>

<pallas_src>
import functools

import jax
import jax.numpy as jnp
from jax.experimental import pallas as pl
from jax.experimental.pallas import tpu as pltpu


def _round_up(x: int, m: int) -> int:
    return ((x + m - 1) // m) * m


def _vmem_limit(data_bytes: int) -> int:
    # Derived from the actual tile footprint, with headroom for Mosaic internal
    # scratch; capped at v7x's 64 MiB physical VMEM.
    return int(min(64 * 1024 * 1024, max(20 * 1024 * 1024, data_bytes + 12 * 1024 * 1024)))


def _pick_chunk(seq_tile: int) -> int:
    # Chunk of gathered rows per double-buffer slot; must divide the sequence tile.
    for cand in (64, 32, 16, 8):
        if seq_tile % cand == 0:
            return cand
    return seq_tile


# ---------------------------------------------------------------------------
# Fast path: vocab table small enough to keep fully VMEM-resident.
# Gather is a one-hot @ table matmul on the MXU (exact for 0/1 one-hot), so
# there is no per-row DMA traffic at all and no dynamic vector indexing.
# ---------------------------------------------------------------------------
def _resident_kernel(ids_ref, pos_ref, vocab_ref, o_ref):
    ids = ids_ref[...]                                   # (TT, 1) int32
    table = vocab_ref[...]                               # (V, D_pad), VMEM resident
    tt = ids.shape[0]
    v = table.shape[0]
    onehot = (jax.lax.broadcasted_iota(jnp.int32, (tt, v), 1) == ids).astype(table.dtype)
    rows = jnp.dot(onehot, table, preferred_element_type=jnp.float32)   # (TT, D_pad)
    o_ref[...] = (rows + pos_ref[...].astype(jnp.float32)).astype(o_ref.dtype)


def _forward_resident(ids, pos, vocab, *, B, T_pad, TT, n_tiles, D_pad, out_dtype):
    V = vocab.shape[0]
    itemsize = vocab.dtype.itemsize
    tile_bytes = TT * D_pad * itemsize
    need = V * D_pad * itemsize + 4 * tile_bytes + 4 * TT * 4

    ids3 = ids.reshape(B, T_pad, 1)

    grid_spec = pltpu.PrefetchScalarGridSpec(
        num_scalar_prefetch=0,
        grid=(B, n_tiles),
        in_specs=[
            pl.BlockSpec((None, TT, 1), lambda b, s: (b, s, 0)),   # token ids for this tile
            pl.BlockSpec((TT, D_pad), lambda b, s: (s, 0)),        # only the TT pos rows used
            pl.BlockSpec((V, D_pad), lambda b, s: (0, 0)),         # whole vocab table, resident
        ],
        out_specs=pl.BlockSpec((None, TT, D_pad), lambda b, s: (b, s, 0)),
    )
    return pl.pallas_call(
        _resident_kernel,
        out_shape=jax.ShapeDtypeStruct((B, T_pad, D_pad), out_dtype),
        grid_spec=grid_spec,
        compiler_params=pltpu.CompilerParams(
            dimension_semantics=("parallel", "parallel"),
            vmem_limit_bytes=_vmem_limit(need),
        ),
    )(ids3, pos, vocab)


# ---------------------------------------------------------------------------
# General path: vocab table stays in HBM; rows gathered with chunked,
# double-buffered manual DMAs that overlap the add + output store.
# ---------------------------------------------------------------------------
def _hbm_gather_kernel(ids_ref, pos_ref, vocab_hbm, o_ref, rows_ref, sems,
                       *, seq_tile, chunk, n_chunks):
    b = pl.program_id(0)
    s = pl.program_id(1)

    def issue(c, slot):
        # Scalar id reads happen here, before any wait of the previous chunk.
        base = s * seq_tile + c * chunk

        @pl.loop(0, chunk)
        def _(r):
            tok = ids_ref[b, base + r]
            pltpu.make_async_copy(
                vocab_hbm.at[pl.ds(tok, 1), :],
                rows_ref.at[slot, pl.ds(r, 1), :],
                sems.at[slot],
            ).start()

    def drain(slot):
        # Wait once per started copy with an identically-shaped (1, D_pad)
        # descriptor on the same per-slot semaphore: exact accounting.
        @pl.loop(0, chunk)
        def _(r):
            pltpu.make_async_copy(
                vocab_hbm.at[pl.ds(0, 1), :],
                rows_ref.at[slot, pl.ds(r, 1), :],
                sems.at[slot],
            ).wait()

    issue(0, 0)
    for c in range(n_chunks):                 # static, tiny (<= seq_tile / chunk)
        slot = c & 1
        if c + 1 < n_chunks:
            issue(c + 1, (c + 1) & 1)         # next chunk's DMAs in flight ...
        drain(slot)                           # ... while this chunk drains
        lo = c * chunk                        # static offsets -> dense vector load/store
        o_ref[lo:lo + chunk, :] = rows_ref[slot] + pos_ref[lo:lo + chunk, :]


def _forward_hbm(ids, pos, vocab, *, B, T_pad, TT, n_tiles, D_pad, out_dtype):
    itemsize = vocab.dtype.itemsize
    CG = _pick_chunk(TT)
    n_chunks = TT // CG
    tile_bytes = TT * D_pad * itemsize
    need = 4 * tile_bytes + 2 * CG * D_pad * itemsize

    kernel = functools.partial(_hbm_gather_kernel, seq_tile=TT, chunk=CG, n_chunks=n_chunks)

    grid_spec = pltpu.PrefetchScalarGridSpec(
        num_scalar_prefetch=1,                      # token ids -> SMEM
        grid=(B, n_tiles),
        in_specs=[
            pl.BlockSpec((TT, D_pad), lambda b, s, ids_s: (s, 0)),   # pos rows for this tile
            pl.BlockSpec(memory_space=pl.ANY),                       # vocab stays in HBM
        ],
        out_specs=pl.BlockSpec((None, TT, D_pad), lambda b, s, ids_s: (b, s, 0)),
        scratch_shapes=[
            pltpu.VMEM((2, CG, D_pad), vocab.dtype),   # double-buffered gathered rows
            pltpu.SemaphoreType.DMA((2,)),             # one DMA semaphore per slot
        ],
    )
    return pl.pallas_call(
        kernel,
        out_shape=jax.ShapeDtypeStruct((B, T_pad, D_pad), out_dtype),
        grid_spec=grid_spec,
        compiler_params=pltpu.CompilerParams(
            dimension_semantics=("parallel", "parallel"),
            vmem_limit_bytes=_vmem_limit(need),
        ),
    )(ids, pos, vocab)


# ---------------------------------------------------------------------------
# Public wrapper (== EncoderBlock.forward)
# ---------------------------------------------------------------------------
def encoder_block_forward(input_ids, semantic_table, position_table, *, force_hbm_gather=False):
    """input_ids (B, T) int; semantic_table (V, D); position_table (P, D) -> (B, T, D)."""
    B, T = input_ids.shape
    V, D = semantic_table.shape
    P, Dp = position_table.shape
    assert Dp == D, "embedding dims must match"
    assert T <= P, "sequence length exceeds n_positions"

    dtype = semantic_table.dtype
    itemsize = jnp.dtype(dtype).itemsize

    # Lane-dense output: pad embedding dim to a multiple of 128.
    D_pad = _round_up(D, 128)

    # Sequence tiling: cap the per-step tile footprint (~2 MiB) for v7x VMEM,
    # keep the tile a multiple of 8 sublanes, and make it divide the padded T.
    tt_cap = max(8, min(256, ((2 * 1024 * 1024) // (D_pad * itemsize) // 8) * 8))
    if T <= tt_cap:
        T_pad = _round_up(T, 8)
        TT = T_pad
    else:
        T_pad = _round_up(T, tt_cap)
        TT = tt_cap
    n_tiles = T_pad // TT

    # Clamp ids defensively (OOB id would otherwise mean an OOB HBM DMA), pad T.
    ids = jnp.clip(input_ids.astype(jnp.int32), 0, V - 1)
    ids = jnp.pad(ids, ((0, 0), (0, T_pad - T)))

    # Only the first T positional rows are ever used; pad rows to T_pad, lanes to D_pad.
    pos = jnp.pad(position_table[:T], ((0, T_pad - T), (0, D_pad - D)))
    vocab = jnp.pad(semantic_table, ((0, 0), (0, D_pad - D)))

    table_bytes = V * D_pad * itemsize
    use_resident = (not force_hbm_gather) and (V <= 1024) and (table_bytes <= 4 * 1024 * 1024)
    # TODO(synk): for mid-size tables (<= ~48 MiB on v5e/v6e) a resident path with a true
    # in-kernel dynamic gather (instead of one-hot matmul) would remove HBM row DMAs too.

    if use_resident:
        out = _forward_resident(ids, pos, vocab, B=B, T_pad=T_pad, TT=TT,
                                n_tiles=n_tiles, D_pad=D_pad, out_dtype=dtype)
    else:
        out = _forward_hbm(ids, pos, vocab, B=B, T_pad=T_pad, TT=TT,
                           n_tiles=n_tiles, D_pad=D_pad, out_dtype=dtype)

    return out[:, :T, :D]


if __name__ == "__main__":
    # Small deterministic setup mirroring EncoderBlock.__init__ / forward.
    n_vocab, embed_dim, n_positions = 32, 32, 16
    B, T = 2, 8

    key = jax.random.PRNGKey(0)
    k_sem, k_pos, k_ids = jax.random.split(key, 3)

    semantic_table = jax.random.normal(k_sem, (n_vocab, embed_dim), dtype=jnp.float32)
    position_table = jax.random.normal(k_pos, (n_positions, embed_dim), dtype=jnp.float32)
    input_ids = jax.random.randint(k_ids, (B, T), 0, n_vocab, dtype=jnp.int32)

    # Pure-JAX reference.
    ref = (jnp.take(semantic_table, input_ids, axis=0)
           + position_table[:T][None, :, :])

    # Resident (VMEM table, MXU one-hot gather) path — selected automatically here.
    out_fast = jax.block_until_ready(
        encoder_block_forward(input_ids, semantic_table, position_table))
    assert out_fast.shape == (B, T, embed_dim)
    assert jnp.allclose(out_fast, ref, atol=1e-5), "resident-path mismatch vs reference"

    # General HBM-gather path (chunked, double-buffered manual DMA gather).
    out_dma = jax.block_until_ready(
        encoder_block_forward(input_ids, semantic_table, position_table,
                              force_hbm_gather=True))
    assert out_dma.shape == (B, T, embed_dim)
    assert jnp.allclose(out_dma, ref, atol=1e-5), "HBM-gather-path mismatch vs reference"

    print("KERNEL_OK")
</pallas_src>

<mosaic_0001>
module attributes {stable_mosaic.version = 11 : i64} {
  func.func @_resident_kernel(%arg0: i32, %arg1: i32, %arg2: memref<1x8x1xi32, #tpu.memory_space<vmem>>, %arg3: memref<8x128xf32, #tpu.memory_space<vmem>>, %arg4: memref<32x128xf32, #tpu.memory_space<vmem>>, %arg5: memref<1x8x128xf32, #tpu.memory_space<vmem>>) attributes {dimension_semantics = [#tpu.dimension_semantics<parallel>, #tpu.dimension_semantics<parallel>], iteration_bounds = array<i64: 2, 1>, scalar_prefetch = 0 : i64, scratch_operands = 0 : i64, tpu.core_type = #tpu.core_type<tc>, window_params = [{transform_indices = @transform_0, window_bounds = array<i64: 1, 8, 1>}, {transform_indices = @transform_1, window_bounds = array<i64: 8, 128>}, {pipeline_mode = #tpu.pipeline_mode<synchronous>, transform_indices = @transform_2, window_bounds = array<i64: 32, 128>}, {transform_indices = @transform_3, window_bounds = array<i64: 1, 8, 128>}]} {
    %c0 = arith.constant 0 : index
    %c0_0 = arith.constant 0 : index
    %c0_1 = arith.constant 0 : index
    %0 = vector.load %arg2[%c0, %c0_0, %c0_1] : memref<1x8x1xi32, #tpu.memory_space<vmem>>, vector<1x8x1xi32>
    %1 = vector.shape_cast %0 : vector<1x8x1xi32> to vector<8x1xi32>
    %c0_2 = arith.constant 0 : index
    %c0_3 = arith.constant 0 : index
    %2 = vector.load %arg4[%c0_2, %c0_3] : memref<32x128xf32, #tpu.memory_space<vmem>>, vector<32x128xf32>
    %3 = tpu.iota {dimensions = array<i32: 1>} : vector<8x32xi32>
    %4 = vector.broadcast %1 : vector<8x1xi32> to vector<8x32xi32>
    %5 = arith.cmpi eq, %3, %4 : vector<8x32xi32>
    %6 = arith.extui %5 : vector<8x32xi1> to vector<8x32xi32>
    %7 = arith.sitofp %6 : vector<8x32xi32> to vector<8x32xf32>
    %cst = arith.constant dense<0.000000e+00> : vector<8x128xf32>
    %8 = tpu.matmul %7, %2, %cst {dimension_numbers = #tpu.dot_dimension_numbers<[1], [0], [0], [1], [0, 0, 1, 1], [], []>} : vector<8x32xf32>, vector<32x128xf32>, vector<8x128xf32> -> vector<8x128xf32>
    %c0_4 = arith.constant 0 : index
    %c0_5 = arith.constant 0 : index
    %9 = vector.load %arg3[%c0_4, %c0_5] : memref<8x128xf32, #tpu.memory_space<vmem>>, vector<8x128xf32>
    %10 = arith.addf %8, %9 : vector<8x128xf32>
    %c0_6 = arith.constant 0 : index
    %c0_7 = arith.constant 0 : index
    %c0_8 = arith.constant 0 : index
    %11 = vector.load %arg5[%c0_6, %c0_7, %c0_8] : memref<1x8x128xf32, #tpu.memory_space<vmem>>, vector<1x8x128xf32>
    %12 = vector.shape_cast %11 : vector<1x8x128xf32> to vector<8x128xf32>
    %13 = vector.shape_cast %10 : vector<8x128xf32> to vector<1x8x128xf32>
    tpu.vector_store %arg5[%c0_6, %c0_7, %c0_8], %13 {strides = array<i32>} : memref<1x8x128xf32, #tpu.memory_space<vmem>>, vector<1x8x128xf32>,
    return
  }
  func.func @transform_0(%arg0: i32, %arg1: i32) -> (i32, i32, i32) {
    %c0_i32 = arith.constant 0 : i32
    %c0_i32_0 = arith.constant 0 : i32
    return %arg0, %arg1, %c0_i32 : i32, i32, i32
  }
  func.func @transform_1(%arg0: i32, %arg1: i32) -> (i32, i32) {
    %c0_i32 = arith.constant 0 : i32
    %c0_i32_0 = arith.constant 0 : i32
    return %arg1, %c0_i32 : i32, i32
  }
  func.func @transform_2(%arg0: i32, %arg1: i32) -> (i32, i32) {
    %c0_i32 = arith.constant 0 : i32
    %c0_i32_0 = arith.constant 0 : i32
    %c0_i32_1 = arith.constant 0 : i32
    return %c0_i32, %c0_i32_0 : i32, i32
  }
  func.func @transform_3(%arg0: i32, %arg1: i32) -> (i32, i32, i32) {
    %c0_i32 = arith.constant 0 : i32
    %c0_i32_0 = arith.constant 0 : i32
    return %arg0, %arg1, %c0_i32 : i32, i32, i32
  }
}

</mosaic_0001>

<llo_original>
// kernel: tpu_custom_call.1
$region0: #{tpu_custom_call.1}
  #allocation0 [shape = 'u32[]', space=smem, size = 0x4, offset = 0x4, fixed_abs, tag = 'smem constant byte address 0x4 - core index']
  #allocation1 [shape = 'u32[72,128]{1,0:T(1,128)}', space=vmem, size = 0x9000, scoped, tag = 'internal scratch']
  %s0 = inlined_call_operand.vmem [shape: s32[2,8,1], index: 0, kind: input, shape index: {}]
  %s1 = inlined_call_operand.vmem [shape: f32[8,128], index: 1, kind: input, shape index: {}]
  %s2 = inlined_call_operand.hbm [shape: f32[32,128], index: 2, kind: input, shape index: {}]
  %s3 = inlined_call_operand.hbm [shape: f32[2,8,128], index: 3, kind: output, shape index: {}]
  %s4 = sld [smem:[#allocation0]]
  $region49: #{tpu_custom_call.1} parent=0
    _
  %s6 = ssub.s32 1, %s4
  %s7 = scalar_select 0, %s6, %s4
  $region1: #{tpu_custom_call.1} parent=0
    #allocation2 [shape = 'u8[16384]{0}', space=vmem, size = 0x4000, scoped, tag = 'input window, operand 2, single buffered']
    #allocation3 [shape = 's32[2]{0}', space=sflag, size = 0x8, scoped, tag = 'scoped memory for tpu_custom_call.1']
    #allocation4 [shape = 's32[2]{0}', space=sflag, size = 0x8, scoped, tag = 'scoped memory for tpu_custom_call.1']
    #allocation5 [shape = 'u8[8192]{0}', space=vmem, size = 0x2000, scoped, tag = 'output window, operand 0']
    %8 = vsyncpa [#allocation3], 0
    %9 = vsyncpa [#allocation4], 0
    %s10 = scalar_lea.sflag [#allocation4], 1
    %11 = vsyncpa %s10, 0
    loop: start=0, step=1, limit=4
    $region2: #{tpu_custom_call.1} parent=1 // loop_pre_header
      _
    $region3: #{tpu_custom_call.1} parent=1 // loop_header
      %s13 = sphi 0, %s17
      %p14 = scmp.ge.s32.totalorder %s13, 4
      %s20 = sphi 0, %s32
      %s21 = sphi 0, %s28
      %s22 = sphi 0, %s20
      %s23 = sphi 0, %s21
      %s24 = sphi 0, %s22
      %s25 = sphi 0, %s23
      %s37 = sphi 0, %s39
      %s40 = sphi 0, %s37
      %s41 = sphi 0, %s40
      %s57 = sphi 0, %s41
      %s63 = sphi 0, %s65
      %s66 = sphi 0, %s63
      %s67 = sphi 0, %s66
      %s83 = sphi 0, %s67
      %s87 = sphi 0, %s87
      %s89 = sphi 0, %s87
      %s90 = sphi 0, %s89
      %s104 = sphi 0, %s90
      %s112 = sphi 0, %s114
      %s115 = sphi 0, %s112
      %s116 = sphi 0, %s115
      %s132 = sphi 0, %s116
    $region4: #{tpu_custom_call.1} parent=1 // loop_header_branch
      %16 = sbr.rel (%p14) target = $region8
    $region5: #{tpu_custom_call.1} parent=1 // loop_body
      %s18 = ssub.s32 %s13, 1
      %s19 = ssub.s32 %s13, 2
      %s26 = sadd.s32 1, %s21
      %p27 = scmp.ge.s32.totalorder %s26, 1
      %s28 = scalar_select %p27, 0, %s26
      %s29 = sadd.s32 1, %s20
      %s30 = scalar_select %p27, %s29, %s20
      %p31 = scmp.ge.s32.totalorder %s30, 2
      %s32 = scalar_select %p31, 0, %s30
      %s33 = ssub.s32 %s20, %s32
      %s34 = ssub.s32 %s21, %s28
      %s35 = sor.u32 %s33, %s34
      %p36 = scmp.eq.s32.totalorder %s35, 0
      %s38 = sadd.s32 %s37, 1
      %s39 = scalar_select %p36, %s37, %s38
      %p42 = pneg %p36
      %p43 = scmp.eq.s32.totalorder %s13, 1
      %p44 = por %p42, %p43
      %p45 = scmp.ne.s32.totalorder %s37, %s40
      %p46 = scmp.eq.s32.totalorder %s13, 0
      %p47 = por %p45, %p46
      %p48 = scmp.ne.s32.totalorder %s37, %s40
      %p49 = scmp.eq.s32.totalorder %s18, 1
      %p50 = por %p48, %p49
      %p51 = scmp.ne.s32.totalorder %s40, %s41
      %p52 = scmp.eq.s32.totalorder %s18, 0
      %p53 = por %p51, %p52
      %p54 = scmp.ne.s32.totalorder %s40, %s41
      %p55 = scmp.eq.s32.totalorder %s19, 1
      %p56 = por %p54, %p55
      %p58 = scmp.ne.s32.totalorder %s41, %s57
      %p59 = scmp.eq.s32.totalorder %s19, 0
      %p60 = por %p58, %p59
      %s61 = ssub.s32 %s21, %s28
      %p62 = scmp.eq.s32.totalorder %s61, 0
      %s64 = sadd.s32 %s63, 1
      %s65 = scalar_select %p62, %s63, %s64
      %p68 = pneg %p62
      %p69 = scmp.eq.s32.totalorder %s13, 1
      %p70 = por %p68, %p69
      %p71 = scmp.ne.s32.totalorder %s63, %s66
      %p72 = scmp.eq.s32.totalorder %s13, 0
      %p73 = por %p71, %p72
      %p74 = scmp.ne.s32.totalorder %s63, %s66
      %p75 = scmp.eq.s32.totalorder %s18, 1
      %p76 = por %p74, %p75
      %p77 = scmp.ne.s32.totalorder %s66, %s67
      %p78 = scmp.eq.s32.totalorder %s18, 0
      %p79 = por %p77, %p78
      %p80 = scmp.ne.s32.totalorder %s66, %s67
      %p81 = scmp.eq.s32.totalorder %s19, 1
      %p82 = por %p80, %p81
      %p84 = scmp.ne.s32.totalorder %s67, %s83
      %p85 = scmp.eq.s32.totalorder %s19, 0
      %p86 = por %p84, %p85
      %s88 = sadd.s32 %s87, 1
      %p91 = scmp.eq.s32.totalorder %s13, 1
      %p92 = scmp.ne.s32.totalorder %s87, %s89
      %p93 = scmp.eq.s32.totalorder %s13, 0
      %p94 = por %p92, %p93
      %p95 = scmp.ne.s32.totalorder %s87, %s89
      %p96 = scmp.eq.s32.totalorder %s18, 1
      %p97 = por %p95, %p96
      %p98 = scmp.ne.s32.totalorder %s89, %s90
      %p99 = scmp.eq.s32.totalorder %s18, 0
      %p100 = por %p98, %p99
      %p101 = scmp.ne.s32.totalorder %s89, %s90
      %p102 = scmp.eq.s32.totalorder %s19, 1
      %p103 = por %p101, %p102
      %p105 = scmp.ne.s32.totalorder %s90, %s104
      %p106 = scmp.eq.s32.totalorder %s19, 0
      %p107 = por %p105, %p106
      %s108 = ssub.s32 %s20, %s32
      %s109 = ssub.s32 %s21, %s28
      %s110 = sor.u32 %s108, %s109
      %p111 = scmp.eq.s32.totalorder %s110, 0
      %s113 = sadd.s32 %s112, 1
      %s114 = scalar_select %p111, %s112, %s113
      %p117 = pneg %p111
      %p118 = scmp.eq.s32.totalorder %s13, 1
      %p119 = por %p117, %p118
      %p120 = scmp.ne.s32.totalorder %s112, %s115
      %p121 = scmp.eq.s32.totalorder %s13, 0
      %p122 = por %p120, %p121
      %p123 = scmp.ne.s32.totalorder %s112, %s115
      %p124 = scmp.eq.s32.totalorder %s18, 1
      %p125 = por %p123, %p124
      %p126 = scmp.ne.s32.totalorder %s115, %s116
      %p127 = scmp.eq.s32.totalorder %s18, 0
      %p128 = por %p126, %p127
      %p129 = scmp.ne.s32.totalorder %s115, %s116
      %p130 = scmp.eq.s32.totalorder %s19, 1
      %p131 = por %p129, %p130
      %p133 = scmp.ne.s32.totalorder %s116, %s132
      %p134 = scmp.eq.s32.totalorder %s19, 0
      %p135 = por %p133, %p134
      %p136 = scmp.le.s32.totalorder 1, %s13
      %p137 = scmp.lt.s32.totalorder %s13, 3
      %p138 = pnand %p136, %p137
      %p139 = pneg %p138
      // Predicated region
      $region9: #{tpu_custom_call.1} parent=5 // pred_check
        _
      $region10: #{tpu_custom_call.1} parent=5 // pred_check_branch
        %141 = sbr.rel (%p138) target = $region12
      $region11: #{tpu_custom_call.1} parent=5 // pred_region
        %s142 = ssub.s32 %s13, 1
        // Predicated region
        $region13: #{tpu_custom_call.1} parent=11 // pred_check
          %p143 = pneg %p79
        $region14: #{tpu_custom_call.1} parent=11 // pred_check_branch
          %145 = sbr.rel (%p143) target = $region16
        $region15: #{tpu_custom_call.1} parent=11 // pred_region
          %p146 = scmp.lt.s32.totalorder %s23, 0
          %s147 = scalar_select %p146, %s23, 0
          %s148 = smul.addr %s147, 8
          %s149 = scalar_lea.vmem %s1, %s148
        $region16: #{tpu_custom_call.1} parent=11 // pred_fallthru
          _
        // Predicated region
        $region17: #{tpu_custom_call.1} parent=11 // pred_check
          %p150 = pneg %p100
        $region18: #{tpu_custom_call.1} parent=11 // pred_check_branch
          %152 = sbr.rel (%p150) target = $region20
        $region19: #{tpu_custom_call.1} parent=11 // pred_region
          %154 = vsyncadd [#allocation3], 0
          %s155 = sshll.u32 %s2, 4
          %s156 = int_to_ptr.hbm [resolvable:$true] %s155
          %s157 = sshll.u32 [#allocation2], 4
          %s158 = int_to_ptr.vmem [resolvable:$true] %s157
          %163 = dma.hbm_to_vmem [thread:$0]  %s156, 512, %s158, [#allocation3], 128, 128, 8
        $region20: #{tpu_custom_call.1} parent=11 // pred_fallthru
          _
      $region12: #{tpu_custom_call.1} parent=5 // pred_fallthru
        _
      %p164 = scmp.lt.s32.totalorder %s13, 2
      // Predicated region
      $region21: #{tpu_custom_call.1} parent=5 // pred_check
        %p165 = pneg %p164
      $region22: #{tpu_custom_call.1} parent=5 // pred_check_branch
        %167 = sbr.rel (%p165) target = $region24
      $region23: #{tpu_custom_call.1} parent=5 // pred_region
        // Predicated region
        $region25: #{tpu_custom_call.1} parent=23 // pred_check
          %p168 = pneg %p47
        $region26: #{tpu_custom_call.1} parent=23 // pred_check_branch
          %170 = sbr.rel (%p168) target = $region28
        $region27: #{tpu_custom_call.1} parent=23 // pred_region
          %p171 = scmp.lt.s32.totalorder %s20, 1
          %s172 = scalar_select %p171, %s20, 1
          %p173 = scmp.lt.s32.totalorder %s21, 0
          %s174 = scalar_select %p173, %s21, 0
          %s175 = sadd.s32 %s174, %s172
          %s176 = smul.addr %s175, 8
          %s177 = scalar_lea.vmem %s0, %s176
        $region28: #{tpu_custom_call.1} parent=23 // pred_fallthru
          _
      $region24: #{tpu_custom_call.1} parent=5 // pred_fallthru
        _
      %p178 = scmp.le.s32.totalorder 1, %s13
      %p179 = scmp.lt.s32.totalorder %s13, 3
      %p180 = pnand %p178, %p179
      %p181 = pneg %p180
      // Predicated region
      $region29: #{tpu_custom_call.1} parent=5 // pred_check
        _
      $region30: #{tpu_custom_call.1} parent=5 // pred_check_branch
        %183 = sbr.rel (%p180) target = $region32
      $region31: #{tpu_custom_call.1} parent=5 // pred_region
        %s184 = ssub.s32 %s13, 1
        // Predicated region
        $region33: #{tpu_custom_call.1} parent=31 // pred_check
          %p185 = pneg %p100
        $region34: #{tpu_custom_call.1} parent=31 // pred_check_branch
          %187 = sbr.rel (%p185) target = $region36
        $region35: #{tpu_custom_call.1} parent=31 // pred_region
          %189 = dma.done [#allocation3], 512
        $region36: #{tpu_custom_call.1} parent=31 // pred_fallthru
          _
        %p190 = scmp.lt.s32.totalorder %s22, 1
        %s191 = scalar_select %p190, %s22, 1
        %p192 = scmp.lt.s32.totalorder %s23, 0
        %s193 = scalar_select %p192, %s23, 0
        %s194 = sadd.s32 %s193, %s191
        %s195 = smul.addr %s194, 8
        %s196 = scalar_lea.vmem %s0, %s195
        %p197 = pneg %p53
        %p198 = pneg %p50
        %p199 = scmp.lt.s32.totalorder %s23, 0
        %s200 = scalar_select %p199, %s23, 0
        %s201 = smul.addr %s200, 8
        %s202 = scalar_lea.vmem %s1, %s201
        %p203 = pneg %p79
        %p204 = pneg %p76
        %p205 = pneg %p100
        %p206 = pneg %p97
        %p207 = pneg %p128
        %p208 = pneg %p125
        %s209 = sand.u32 %s115, 1
        %s210 = scalar_lea.sflag [#allocation4], %s209
        %s211 = sand.u32 %s115, 1
        %s212 = smul.addr %s211, 8
        %s213 = scalar_lea.vmem [#allocation5], %s212
        %p214 = scmp.lt.s32.totalorder %s22, 1
        %s215 = scalar_select %p214, %s22, 1
        %p216 = scmp.lt.s32.totalorder %s23, 0
        %s217 = scalar_select %p216, %s23, 0
        %s218 = sadd.s32 %s217, %s215
        %s219 = smul.addr %s218, 8
        %s220 = scalar_lea.vmem %s0, %s219
        %p221 = scmp.lt.s32.totalorder %s23, 0
        %s222 = scalar_select %p221, %s23, 0
        %s223 = smul.addr %s222, 8
        %s224 = scalar_lea.vmem %s1, %s223
        %v225 = vld [vmem:[%s220] sm:$0xff]
        %v226 = vld [vmem:[#allocation2] sm:$0xff]
        %v227 = vld [vmem:[#allocation2 + $0x8] sm:$0xff]
        %v228 = vld [vmem:[#allocation2 + $0x10] sm:$0xff]
        %v229 = vld [vmem:[#allocation2 + $0x18] sm:$0xff]
        %v230 = vlaneseq
        %v231 = vand.u32 %v230, 127
        %232 = vset.pattern.permute.xlu0 0
        %233 = vperm.xlu0 %232, %v225
        %v234 = vpop.permute.xlu0 %233
        %vm235 = vcmp.eq.s32.totalorder %v231, %v234
        %v236 = vsel %vm235, 1, 0
        %v237 = vcvt.s32.f32 %v236
        %v238 = vld [vmem:[%s224] sm:$0xff]
        %vm239 = vcmask 261120
        %v241 = vsel %vm239, %v237, 0
        %243 = vmatpush.msra.mxu0 0.0
        %244 = vmatpush.msra.mxu0 0.0
        %245 = vmatpush.msra.mxu0 0.0
        %246 = vmatpush.msra.mxu0 0.0
        %247 = vmatpush.msra.mxu0 0.0
        %248 = vmatpush.msra.mxu0 0.0
        %249 = vmatpush.msra.mxu0 0.0
        %250 = vmatpush.msra.mxu0 0.0
        %251 = vmatpush.msra.mxu0 0.0
        %252 = vmatpush.msra.mxu0 0.0
        %253 = vmatpush.msra.mxu0 0.0
        %254 = vmatpush.msra.mxu0 0.0
        %255 = vmatpush.msra.mxu0 %v229
        %256 = vmatpush.msra.mxu0 %v228
        %257 = vmatpush.msra.mxu0 %v227
        %258 = vmatpush.msra.mxu0 %v226
        %259 = vmatmul.f32.gmra.mxu0 %v241
        %v260 = vpop.f32.mrf.mxu0
        %v261 = vadd.f32 %v238, %v260
        %262 = vdwg.mxu0
        %263 = vst [vmem:[%s213] sm:$0xff] %v261
        %s264 = sand.u32 %s115, 1
        %s265 = scalar_lea.sflag [#allocation4], %s264
        %s266 = sand.u32 %s115, 1
        %s267 = smul.addr %s266, 8
        %s268 = scalar_lea.vmem [#allocation5], %s267
        // Predicated region
        $region37: #{tpu_custom_call.1} parent=31 // pred_check
          %p269 = pneg %p125
        $region38: #{tpu_custom_call.1} parent=31 // pred_check_branch
          %271 = sbr.rel (%p269) target = $region40
        $region39: #{tpu_custom_call.1} parent=31 // pred_region
          %273 = vsyncadd %s265, 0
          %s274 = sadd.s32 %s23, %s22
          %s275 = smul.addr %s274, 8
          %s276 = scalar_lea.hbm %s3, %s275
          %s278 = sshll.u32 %s268, 4
          %s279 = int_to_ptr.vmem [resolvable:$true] %s278
          %s280 = sshll.u32 %s276, 4
          %s281 = int_to_ptr.hbm [resolvable:$true] %s280
          %283 = dma.vmem_to_hbm [thread:$0]  %s279, 128, %s281, %s265
        $region40: #{tpu_custom_call.1} parent=31 // pred_fallthru
          _
      $region32: #{tpu_custom_call.1} parent=5 // pred_fallthru
        _
      %p284 = scmp.le.s32.totalorder 2, %s13
      // Predicated region
      $region41: #{tpu_custom_call.1} parent=5 // pred_check
        %p285 = pneg %p284
      $region42: #{tpu_custom_call.1} parent=5 // pred_check_branch
        %287 = sbr.rel (%p285) target = $region44
      $region43: #{tpu_custom_call.1} parent=5 // pred_region
        %s288 = ssub.s32 %s13, 2
        // Predicated region
        $region45: #{tpu_custom_call.1} parent=43 // pred_check
          %p289 = pneg %p131
        $region46: #{tpu_custom_call.1} parent=43 // pred_check_branch
          %291 = sbr.rel (%p289) target = $region48
        $region47: #{tpu_custom_call.1} parent=43 // pred_region
          %s292 = sand.u32 %s116, 1
          %s293 = scalar_lea.sflag [#allocation4], %s292
          %s294 = sand.u32 %s116, 1
          %s295 = smul.addr %s294, 8
          %s296 = scalar_lea.vmem [#allocation5], %s295
          %298 = dma.done %s293, 128
        $region48: #{tpu_custom_call.1} parent=43 // pred_fallthru
          _
      $region44: #{tpu_custom_call.1} parent=5 // pred_fallthru
        _
    $region6: #{tpu_custom_call.1} parent=1 // loop_footer
      %s17 = sadd.s32 1, %s13
    $region7: #{tpu_custom_call.1} parent=1 // loop_footer_branch
      %12 = sbr.rel target = $region3
    $region8: #{tpu_custom_call.1} parent=1 // loop_exit
      _
    %299 = vsyncpa [#allocation3], 1
    %s300 = scalar_lea.sflag [#allocation3], 1
    %301 = vsyncpa %s300, 1
    %302 = vsyncpa [#allocation4], 1
    %s303 = scalar_lea.sflag [#allocation4], 1
    %304 = vsyncpa %s303, 1

</llo_original>
